<compile_context>
chip_gen: v7x
topology: tpu7x:2x2x1
jax: 0.10.0
libtpu: 0.0.40
codegen_flags: <defaults>
</compile_context>

<pallas_src>
import jax
import jax.numpy as jnp
import numpy as np
from jax.experimental import pallas as pl
from jax.experimental.pallas import tpu as pltpu

BN_EPS = 1e-5


def _im2col_k3(hp):
    """hp: (C, L+2), zero-padded along the lane (sequence) axis.

    Returns (3C, L) with sublane row-blocks [h[:, l-1]; h[:, l]; h[:, l+1]] (tap-major),
    matching the (Cout, 3*Cin) folded weight layout.
    """
    L = hp.shape[1] - 2
    return jnp.concatenate([hp[:, 0:L], hp[:, 1:L + 1], hp[:, 2:L + 2]], axis=0)


def convnet_kernel(xp_ref, w1_ref, t1_ref, w2_ref, t2_ref, out_ref):
    """One batch element: conv1(+bn1)+relu -> conv2(+bn2)+relu -> mean over L."""
    xp = xp_ref[0]                     # (E, L+2), compute dtype (bf16), zero-padded in glue
    L = xp.shape[1] - 2

    # ---- layer 1: single fused-tap MXU matmul (20, 3E) @ (3E, L), f32 accumulate ----
    y1 = jnp.dot(w1_ref[...], _im2col_k3(xp), preferred_element_type=jnp.float32)
    h1 = jnp.maximum(y1 + t1_ref[...], 0.0)          # folded conv-bias + BN, then ReLU (f32)

    # ---- layer 2: in-kernel zero pad, fused-tap matmul (2, 60) @ (60, L) ----
    h1b = h1.astype(w2_ref.dtype)                    # bf16 MXU operand, f32 accumulation
    zcol = jnp.zeros((h1b.shape[0], 1), h1b.dtype)
    h1p = jnp.concatenate([zcol, h1b, zcol], axis=1)  # (20, L+2)
    y2 = jnp.dot(w2_ref[...], _im2col_k3(h1p), preferred_element_type=jnp.float32)
    h2 = jnp.maximum(y2 + t2_ref[...], 0.0)           # (2, L), f32

    # ---- mean over sequence: XLU lane-sum * compile-time reciprocal ----
    out_ref[0] = (jnp.sum(h2, axis=1, keepdims=True) * (1.0 / L)).astype(out_ref.dtype)


def convnet_forward(tokens, params, compute_dtype=jnp.bfloat16):
    """tokens: (B, L) int32 -> (B, 2) f32.  compute_dtype controls the MXU operand dtype."""
    # Embedding lookup (gather) is glue in plain JAX.
    xe = jnp.take(params["embed"], tokens, axis=0)                 # (B, L, E) f32
    B, L, E = xe.shape
    x = jnp.transpose(xe, (0, 2, 1))                               # (B, E, L) channels-first
    xp = jnp.pad(x, ((0, 0), (0, 0), (1, 1))).astype(compute_dtype)  # (B, E, L+2), zero pad

    def fold_conv_bn(w, b, bn):
        gamma, beta, mean, var = bn
        s = gamma / jnp.sqrt(var + BN_EPS)                          # (Cout,), f32 fold
        # PyTorch Conv1d weight (Cout, Cin, K) -> tap-major (Cout, K*Cin) matching im2col rows.
        w_cat = jnp.transpose(w, (0, 2, 1)).reshape(w.shape[0], -1)
        w_cat = (w_cat * s[:, None]).astype(compute_dtype)          # fold BN scale into weights
        t = (s * (b - mean) + beta).reshape(-1, 1).astype(jnp.float32)
        return w_cat, t

    w1c, t1 = fold_conv_bn(params["w1"], params["b1"], params["bn1"])   # (20, 3E), (20, 1)
    w2c, t2 = fold_conv_bn(params["w2"], params["b2"], params["bn2"])   # (2, 60),  (2, 1)

    Lp = L + 2
    out3 = pl.pallas_call(
        convnet_kernel,
        out_shape=jax.ShapeDtypeStruct((B, 2, 1), jnp.float32),
        grid=(B,),
        in_specs=[
            pl.BlockSpec((1, E, Lp), lambda b: (b, 0, 0)),   # per-batch activation tile
            pl.BlockSpec(w1c.shape, lambda b: (0, 0)),        # folded weights stay resident
            pl.BlockSpec(t1.shape, lambda b: (0, 0)),
            pl.BlockSpec(w2c.shape, lambda b: (0, 0)),
            pl.BlockSpec(t2.shape, lambda b: (0, 0)),
        ],
        out_specs=pl.BlockSpec((1, 2, 1), lambda b: (b, 0, 0)),
        compiler_params=pltpu.CompilerParams(
            dimension_semantics=("parallel",),   # batch grid shards across v7x's 2 TCs
        ),
    )(xp, w1c, t1, w2c, t2)
    return out3[:, :, 0]                                            # (B, 2)


def reference_forward(tokens, params):
    """Pure-JAX reference mirroring the PyTorch forward (eval mode)."""
    xe = jnp.take(params["embed"], tokens, axis=0)     # (B, L, E)
    x = jnp.transpose(xe, (0, 2, 1))                   # (B, E, L)  NCL

    def block(x, w, b, bn):
        y = jax.lax.conv_general_dilated(
            x, w, window_strides=(1,), padding=((1, 1),),
            dimension_numbers=("NCH", "OIH", "NCH"))
        y = y + b.reshape(1, -1, 1)
        gamma, beta, mean, var = bn
        y = (y - mean.reshape(1, -1, 1)) / jnp.sqrt(var.reshape(1, -1, 1) + BN_EPS)
        y = y * gamma.reshape(1, -1, 1) + beta.reshape(1, -1, 1)
        return jnp.maximum(y, 0.0)

    x = block(x, params["w1"], params["b1"], params["bn1"])
    x = block(x, params["w2"], params["b2"], params["bn2"])
    return jnp.mean(x, axis=2)


def make_params(key, vocab, embed_size):
    ks = jax.random.split(key, 16)
    p = {}
    p["embed"] = jax.random.normal(ks[0], (vocab, embed_size), jnp.float32)
    p["w1"] = 0.1 * jax.random.normal(ks[1], (20, embed_size, 3), jnp.float32)
    p["b1"] = 0.1 * jax.random.normal(ks[2], (20,), jnp.float32)
    p["bn1"] = (1.0 + 0.1 * jax.random.normal(ks[3], (20,), jnp.float32),   # gamma
                0.1 * jax.random.normal(ks[4], (20,), jnp.float32),         # beta
                0.1 * jax.random.normal(ks[5], (20,), jnp.float32),         # running_mean
                jax.random.uniform(ks[6], (20,), jnp.float32, 0.5, 1.5))    # running_var
    p["w2"] = 0.1 * jax.random.normal(ks[7], (2, 20, 3), jnp.float32)
    p["b2"] = 0.1 * jax.random.normal(ks[8], (2,), jnp.float32)
    p["bn2"] = (1.0 + 0.1 * jax.random.normal(ks[9], (2,), jnp.float32),
                0.1 * jax.random.normal(ks[10], (2,), jnp.float32),
                0.1 * jax.random.normal(ks[11], (2,), jnp.float32),
                jax.random.uniform(ks[12], (2,), jnp.float32, 0.5, 1.5))
    return p, ks[13]


if __name__ == "__main__":
    VOCAB, EMBED, BATCH, SEQ = 50, 32, 2, 8
    key = jax.random.PRNGKey(0)
    params, key_tok = make_params(key, VOCAB, EMBED)
    tokens = jax.random.randint(key_tok, (BATCH, SEQ), 0, VOCAB, dtype=jnp.int32)

    ref = jax.block_until_ready(reference_forward(tokens, params))

    # 1) f32 compute path: validates structure (tap order, BN/bias fold, padding) tightly.
    out_f32 = jax.block_until_ready(convnet_forward(tokens, params, compute_dtype=jnp.float32))
    assert out_f32.shape == (BATCH, 2), out_f32.shape
    np.testing.assert_allclose(np.asarray(out_f32), np.asarray(ref), rtol=1e-3, atol=1e-3)

    # 2) Default bf16-MXU-operand path (f32 accumulation): looser tolerance for bf16 rounding.
    out_bf16 = jax.block_until_ready(convnet_forward(tokens, params, compute_dtype=jnp.bfloat16))
    assert out_bf16.shape == (BATCH, 2), out_bf16.shape
    np.testing.assert_allclose(np.asarray(out_bf16), np.asarray(ref), rtol=3e-2, atol=3e-2)

    print("KERNEL_OK")
</pallas_src>

<mosaic_0001>
module attributes {stable_mosaic.version = 11 : i64} {
  func.func @convnet_kernel(%arg0: i32, %arg1: memref<1x32x10xf32, #tpu.memory_space<vmem>>, %arg2: memref<20x96xf32, #tpu.memory_space<vmem>>, %arg3: memref<20x1xf32, #tpu.memory_space<vmem>>, %arg4: memref<2x60xf32, #tpu.memory_space<vmem>>, %arg5: memref<2x1xf32, #tpu.memory_space<vmem>>, %arg6: memref<1x2x1xf32, #tpu.memory_space<vmem>>) attributes {dimension_semantics = [#tpu.dimension_semantics<parallel>], iteration_bounds = array<i64: 2>, scalar_prefetch = 0 : i64, scratch_operands = 0 : i64, tpu.core_type = #tpu.core_type<tc>, window_params = [{transform_indices = @transform_0, window_bounds = array<i64: 1, 32, 10>}, {pipeline_mode = #tpu.pipeline_mode<synchronous>, transform_indices = @transform_1, window_bounds = array<i64: 20, 96>}, {pipeline_mode = #tpu.pipeline_mode<synchronous>, transform_indices = @transform_2, window_bounds = array<i64: 20, 1>}, {pipeline_mode = #tpu.pipeline_mode<synchronous>, transform_indices = @transform_3, window_bounds = array<i64: 2, 60>}, {pipeline_mode = #tpu.pipeline_mode<synchronous>, transform_indices = @transform_4, window_bounds = array<i64: 2, 1>}, {transform_indices = @transform_5, window_bounds = array<i64: 1, 2, 1>}]} {
    %c0 = arith.constant 0 : index
    %c0_0 = arith.constant 0 : index
    %c0_1 = arith.constant 0 : index
    %0 = vector.load %arg1[%c0, %c0_0, %c0_1] : memref<1x32x10xf32, #tpu.memory_space<vmem>>, vector<1x32x10xf32>
    %1 = vector.shape_cast %0 : vector<1x32x10xf32> to vector<32x10xf32>
    %c0_2 = arith.constant 0 : index
    %c0_3 = arith.constant 0 : index
    %2 = vector.load %arg2[%c0_2, %c0_3] : memref<20x96xf32, #tpu.memory_space<vmem>>, vector<20x96xf32>
    %3 = vector.extract_strided_slice %1 {offsets = [0, 0], sizes = [32, 8], strides = [1, 1]} : vector<32x10xf32> to vector<32x8xf32>
    %4 = vector.extract_strided_slice %1 {offsets = [0, 1], sizes = [32, 8], strides = [1, 1]} : vector<32x10xf32> to vector<32x8xf32>
    %5 = vector.extract_strided_slice %1 {offsets = [0, 2], sizes = [32, 8], strides = [1, 1]} : vector<32x10xf32> to vector<32x8xf32>
    %6 = tpu.concatenate %3, %4, %5 in 0 : vector<32x8xf32>, vector<32x8xf32>, vector<32x8xf32> -> vector<96x8xf32>
    %cst = arith.constant dense<0.000000e+00> : vector<20x8xf32>
    %7 = tpu.matmul %2, %6, %cst {dimension_numbers = #tpu.dot_dimension_numbers<[1], [0], [0], [1], [0, 0, 1, 1], [], []>} : vector<20x96xf32>, vector<96x8xf32>, vector<20x8xf32> -> vector<20x8xf32>
    %c0_4 = arith.constant 0 : index
    %c0_5 = arith.constant 0 : index
    %8 = vector.load %arg3[%c0_4, %c0_5] : memref<20x1xf32, #tpu.memory_space<vmem>>, vector<20x1xf32>
    %9 = vector.broadcast %8 : vector<20x1xf32> to vector<20x8xf32>
    %10 = arith.addf %7, %9 : vector<20x8xf32>
    %cst_6 = arith.constant 0.000000e+00 : f32
    %11 = vector.broadcast %cst_6 : f32 to vector<20x8xf32>
    %12 = arith.maximumf %10, %11 : vector<20x8xf32>
    %cst_7 = arith.constant 0.000000e+00 : f32
    %13 = vector.broadcast %cst_7 : f32 to vector<20x1xf32>
    %14 = tpu.concatenate %13, %12, %13 in 1 : vector<20x1xf32>, vector<20x8xf32>, vector<20x1xf32> -> vector<20x10xf32>
    %c0_8 = arith.constant 0 : index
    %c0_9 = arith.constant 0 : index
    %15 = vector.load %arg4[%c0_8, %c0_9] : memref<2x60xf32, #tpu.memory_space<vmem>>, vector<2x60xf32>
    %16 = vector.extract_strided_slice %14 {offsets = [0, 0], sizes = [20, 8], strides = [1, 1]} : vector<20x10xf32> to vector<20x8xf32>
    %17 = vector.extract_strided_slice %14 {offsets = [0, 1], sizes = [20, 8], strides = [1, 1]} : vector<20x10xf32> to vector<20x8xf32>
    %18 = vector.extract_strided_slice %14 {offsets = [0, 2], sizes = [20, 8], strides = [1, 1]} : vector<20x10xf32> to vector<20x8xf32>
    %19 = tpu.concatenate %16, %17, %18 in 0 : vector<20x8xf32>, vector<20x8xf32>, vector<20x8xf32> -> vector<60x8xf32>
    %cst_10 = arith.constant dense<0.000000e+00> : vector<2x8xf32>
    %20 = tpu.matmul %15, %19, %cst_10 {dimension_numbers = #tpu.dot_dimension_numbers<[1], [0], [0], [1], [0, 0, 1, 1], [], []>} : vector<2x60xf32>, vector<60x8xf32>, vector<2x8xf32> -> vector<2x8xf32>
    %c0_11 = arith.constant 0 : index
    %c0_12 = arith.constant 0 : index
    %21 = vector.load %arg5[%c0_11, %c0_12] : memref<2x1xf32, #tpu.memory_space<vmem>>, vector<2x1xf32>
    %22 = vector.broadcast %21 : vector<2x1xf32> to vector<2x8xf32>
    %23 = arith.addf %20, %22 : vector<2x8xf32>
    %cst_13 = arith.constant 0.000000e+00 : f32
    %24 = vector.broadcast %cst_13 : f32 to vector<2x8xf32>
    %25 = arith.maximumf %23, %24 : vector<2x8xf32>
    %cst_14 = arith.constant dense<0.000000e+00> : vector<2xf32>
    %26 = vector.multi_reduction <add>, %25, %cst_14 [1] : vector<2x8xf32> to vector<2xf32>
    %27 = vector.shape_cast %26 : vector<2xf32> to vector<2x1xf32>
    %cst_15 = arith.constant 1.250000e-01 : f32
    %28 = vector.broadcast %cst_15 : f32 to vector<2x1xf32>
    %29 = arith.mulf %27, %28 : vector<2x1xf32>
    %c0_16 = arith.constant 0 : index
    %c0_17 = arith.constant 0 : index
    %c0_18 = arith.constant 0 : index
    %30 = vector.load %arg6[%c0_16, %c0_17, %c0_18] : memref<1x2x1xf32, #tpu.memory_space<vmem>>, vector<1x2x1xf32>
    %31 = vector.shape_cast %30 : vector<1x2x1xf32> to vector<2x1xf32>
    %32 = vector.shape_cast %29 : vector<2x1xf32> to vector<1x2x1xf32>
    tpu.vector_store %arg6[%c0_16, %c0_17, %c0_18], %32 {strides = array<i32>} : memref<1x2x1xf32, #tpu.memory_space<vmem>>, vector<1x2x1xf32>,
    return
  }
  func.func @transform_0(%arg0: i32) -> (i32, i32, i32) {
    %c0_i32 = arith.constant 0 : i32
    %c0_i32_0 = arith.constant 0 : i32
    %c0_i32_1 = arith.constant 0 : i32
    return %arg0, %c0_i32, %c0_i32_0 : i32, i32, i32
  }
  func.func @transform_1(%arg0: i32) -> (i32, i32) {
    %c0_i32 = arith.constant 0 : i32
    %c0_i32_0 = arith.constant 0 : i32
    %c0_i32_1 = arith.constant 0 : i32
    return %c0_i32, %c0_i32_0 : i32, i32
  }
  func.func @transform_2(%arg0: i32) -> (i32, i32) {
    %c0_i32 = arith.constant 0 : i32
    %c0_i32_0 = arith.constant 0 : i32
    %c0_i32_1 = arith.constant 0 : i32
    return %c0_i32, %c0_i32_0 : i32, i32
  }
  func.func @transform_3(%arg0: i32) -> (i32, i32) {
    %c0_i32 = arith.constant 0 : i32
    %c0_i32_0 = arith.constant 0 : i32
    %c0_i32_1 = arith.constant 0 : i32
    return %c0_i32, %c0_i32_0 : i32, i32
  }
  func.func @transform_4(%arg0: i32) -> (i32, i32) {
    %c0_i32 = arith.constant 0 : i32
    %c0_i32_0 = arith.constant 0 : i32
    %c0_i32_1 = arith.constant 0 : i32
    return %c0_i32, %c0_i32_0 : i32, i32
  }
  func.func @transform_5(%arg0: i32) -> (i32, i32, i32) {
    %c0_i32 = arith.constant 0 : i32
    %c0_i32_0 = arith.constant 0 : i32
    %c0_i32_1 = arith.constant 0 : i32
    return %arg0, %c0_i32, %c0_i32_0 : i32, i32, i32
  }
}

</mosaic_0001>

<llo_original>
// kernel: tpu_custom_call.1
$region0: #{tpu_custom_call.1}
  #allocation0 [shape = 'u32[]', space=smem, size = 0x4, offset = 0x4, fixed_abs, tag = 'smem constant byte address 0x4 - core index']
  #allocation1 [shape = 'u32[144,128]{1,0:T(1,128)}', space=vmem, size = 0x12000, scoped, tag = 'internal scratch']
  %s0 = inlined_call_operand.vmem [shape: f32[2,32,10], index: 0, kind: input, shape index: {}]
  %s1 = inlined_call_operand.vmem [shape: f32[20,96], index: 1, kind: input, shape index: {}]
  %s2 = inlined_call_operand.vmem [shape: f32[20,1], index: 2, kind: input, shape index: {}]
  %s3 = inlined_call_operand.vmem [shape: f32[2,60], index: 3, kind: input, shape index: {}]
  %s4 = inlined_call_operand.vmem [shape: f32[2,1], index: 4, kind: input, shape index: {}]
  %s5 = inlined_call_operand.vmem [shape: f32[2,2,1], index: 5, kind: output, shape index: {}]
  %s6 = sld [smem:[#allocation0]]
  $region53: #{tpu_custom_call.1} parent=0
    _
  %s8 = ssub.s32 1, %s6
  %s9 = scalar_select 0, %s8, %s6
  loop: start=0, step=1, limit=4
  $region2: #{tpu_custom_call.1} parent=0 // loop_pre_header
    _
  $region3: #{tpu_custom_call.1} parent=0 // loop_header
    %s11 = sphi 0, %s15
    %p12 = scmp.ge.s32.totalorder %s11, 4
    %s21 = sphi 0, %s23
    %s24 = sphi 0, %s21
    %s25 = sphi 0, %s24
    %s41 = sphi 0, %s25
    %s45 = sphi 0, %s45
    %s47 = sphi 0, %s45
    %s48 = sphi 0, %s47
    %s62 = sphi 0, %s48
    %s66 = sphi 0, %s66
    %s68 = sphi 0, %s66
    %s69 = sphi 0, %s68
    %s83 = sphi 0, %s69
    %s87 = sphi 0, %s87
    %s89 = sphi 0, %s87
    %s90 = sphi 0, %s89
    %s104 = sphi 0, %s90
    %s108 = sphi 0, %s108
    %s110 = sphi 0, %s108
    %s111 = sphi 0, %s110
    %s125 = sphi 0, %s111
    %s131 = sphi 0, %s133
    %s134 = sphi 0, %s131
    %s135 = sphi 0, %s134
    %s151 = sphi 0, %s135
  $region4: #{tpu_custom_call.1} parent=0 // loop_header_branch
    %14 = sbr.rel (%p12) target = $region8
  $region5: #{tpu_custom_call.1} parent=0 // loop_body
    %s16 = ssub.s32 %s11, 1
    %s17 = ssub.s32 %s11, 2
    %s18 = sadd.s32 %s11, 1
    %s19 = ssub.s32 %s11, %s18
    %p20 = scmp.eq.s32.totalorder %s19, 0
    %s22 = sadd.s32 %s21, 1
    %s23 = scalar_select %p20, %s21, %s22
    %p26 = pneg %p20
    %p27 = scmp.eq.s32.totalorder %s11, 1
    %p28 = por %p26, %p27
    %p29 = scmp.ne.s32.totalorder %s21, %s24
    %p30 = scmp.eq.s32.totalorder %s11, 0
    %p31 = por %p29, %p30
    %p32 = scmp.ne.s32.totalorder %s21, %s24
    %p33 = scmp.eq.s32.totalorder %s16, 1
    %p34 = por %p32, %p33
    %p35 = scmp.ne.s32.totalorder %s24, %s25
    %p36 = scmp.eq.s32.totalorder %s16, 0
    %p37 = por %p35, %p36
    %p38 = scmp.ne.s32.totalorder %s24, %s25
    %p39 = scmp.eq.s32.totalorder %s17, 1
    %p40 = por %p38, %p39
    %p42 = scmp.ne.s32.totalorder %s25, %s41
    %p43 = scmp.eq.s32.totalorder %s17, 0
    %p44 = por %p42, %p43
    %s46 = sadd.s32 %s45, 1
    %p49 = scmp.eq.s32.totalorder %s11, 1
    %p50 = scmp.ne.s32.totalorder %s45, %s47
    %p51 = scmp.eq.s32.totalorder %s11, 0
    %p52 = por %p50, %p51
    %p53 = scmp.ne.s32.totalorder %s45, %s47
    %p54 = scmp.eq.s32.totalorder %s16, 1
    %p55 = por %p53, %p54
    %p56 = scmp.ne.s32.totalorder %s47, %s48
    %p57 = scmp.eq.s32.totalorder %s16, 0
    %p58 = por %p56, %p57
    %p59 = scmp.ne.s32.totalorder %s47, %s48
    %p60 = scmp.eq.s32.totalorder %s17, 1
    %p61 = por %p59, %p60
    %p63 = scmp.ne.s32.totalorder %s48, %s62
    %p64 = scmp.eq.s32.totalorder %s17, 0
    %p65 = por %p63, %p64
    %s67 = sadd.s32 %s66, 1
    %p70 = scmp.eq.s32.totalorder %s11, 1
    %p71 = scmp.ne.s32.totalorder %s66, %s68
    %p72 = scmp.eq.s32.totalorder %s11, 0
    %p73 = por %p71, %p72
    %p74 = scmp.ne.s32.totalorder %s66, %s68
    %p75 = scmp.eq.s32.totalorder %s16, 1
    %p76 = por %p74, %p75
    %p77 = scmp.ne.s32.totalorder %s68, %s69
    %p78 = scmp.eq.s32.totalorder %s16, 0
    %p79 = por %p77, %p78
    %p80 = scmp.ne.s32.totalorder %s68, %s69
    %p81 = scmp.eq.s32.totalorder %s17, 1
    %p82 = por %p80, %p81
    %p84 = scmp.ne.s32.totalorder %s69, %s83
    %p85 = scmp.eq.s32.totalorder %s17, 0
    %p86 = por %p84, %p85
    %s88 = sadd.s32 %s87, 1
    %p91 = scmp.eq.s32.totalorder %s11, 1
    %p92 = scmp.ne.s32.totalorder %s87, %s89
    %p93 = scmp.eq.s32.totalorder %s11, 0
    %p94 = por %p92, %p93
    %p95 = scmp.ne.s32.totalorder %s87, %s89
    %p96 = scmp.eq.s32.totalorder %s16, 1
    %p97 = por %p95, %p96
    %p98 = scmp.ne.s32.totalorder %s89, %s90
    %p99 = scmp.eq.s32.totalorder %s16, 0
    %p100 = por %p98, %p99
    %p101 = scmp.ne.s32.totalorder %s89, %s90
    %p102 = scmp.eq.s32.totalorder %s17, 1
    %p103 = por %p101, %p102
    %p105 = scmp.ne.s32.totalorder %s90, %s104
    %p106 = scmp.eq.s32.totalorder %s17, 0
    %p107 = por %p105, %p106
    %s109 = sadd.s32 %s108, 1
    %p112 = scmp.eq.s32.totalorder %s11, 1
    %p113 = scmp.ne.s32.totalorder %s108, %s110
    %p114 = scmp.eq.s32.totalorder %s11, 0
    %p115 = por %p113, %p114
    %p116 = scmp.ne.s32.totalorder %s108, %s110
    %p117 = scmp.eq.s32.totalorder %s16, 1
    %p118 = por %p116, %p117
    %p119 = scmp.ne.s32.totalorder %s110, %s111
    %p120 = scmp.eq.s32.totalorder %s16, 0
    %p121 = por %p119, %p120
    %p122 = scmp.ne.s32.totalorder %s110, %s111
    %p123 = scmp.eq.s32.totalorder %s17, 1
    %p124 = por %p122, %p123
    %p126 = scmp.ne.s32.totalorder %s111, %s125
    %p127 = scmp.eq.s32.totalorder %s17, 0
    %p128 = por %p126, %p127
    %s129 = ssub.s32 %s11, %s18
    %p130 = scmp.eq.s32.totalorder %s129, 0
    %s132 = sadd.s32 %s131, 1
    %s133 = scalar_select %p130, %s131, %s132
    %p136 = pneg %p130
    %p137 = scmp.eq.s32.totalorder %s11, 1
    %p138 = por %p136, %p137
    %p139 = scmp.ne.s32.totalorder %s131, %s134
    %p140 = scmp.eq.s32.totalorder %s11, 0
    %p141 = por %p139, %p140
    %p142 = scmp.ne.s32.totalorder %s131, %s134
    %p143 = scmp.eq.s32.totalorder %s16, 1
    %p144 = por %p142, %p143
    %p145 = scmp.ne.s32.totalorder %s134, %s135
    %p146 = scmp.eq.s32.totalorder %s16, 0
    %p147 = por %p145, %p146
    %p148 = scmp.ne.s32.totalorder %s134, %s135
    %p149 = scmp.eq.s32.totalorder %s17, 1
    %p150 = por %p148, %p149
    %p152 = scmp.ne.s32.totalorder %s135, %s151
    %p153 = scmp.eq.s32.totalorder %s17, 0
    %p154 = por %p152, %p153
    %p155 = scmp.le.s32.totalorder 1, %s11
    %p156 = scmp.lt.s32.totalorder %s11, 3
    %p157 = pnand %p155, %p156
    %p158 = pneg %p157
    // Predicated region
    $region9: #{tpu_custom_call.1} parent=5 // pred_check
      _
    $region10: #{tpu_custom_call.1} parent=5 // pred_check_branch
      %160 = sbr.rel (%p157) target = $region12
    $region11: #{tpu_custom_call.1} parent=5 // pred_region
      %s161 = ssub.s32 %s11, 1
      // Predicated region
      $region13: #{tpu_custom_call.1} parent=11 // pred_check
        %p162 = pneg %p58
      $region14: #{tpu_custom_call.1} parent=11 // pred_check_branch
        %164 = sbr.rel (%p162) target = $region16
      $region15: #{tpu_custom_call.1} parent=11 // pred_region
        _
      $region16: #{tpu_custom_call.1} parent=11 // pred_fallthru
        _
      // Predicated region
      $region17: #{tpu_custom_call.1} parent=11 // pred_check
        %p165 = pneg %p79
      $region18: #{tpu_custom_call.1} parent=11 // pred_check_branch
        %167 = sbr.rel (%p165) target = $region20
      $region19: #{tpu_custom_call.1} parent=11 // pred_region
        _
      $region20: #{tpu_custom_call.1} parent=11 // pred_fallthru
        _
      // Predicated region
      $region21: #{tpu_custom_call.1} parent=11 // pred_check
        %p168 = pneg %p100
      $region22: #{tpu_custom_call.1} parent=11 // pred_check_branch
        %170 = sbr.rel (%p168) target = $region24
      $region23: #{tpu_custom_call.1} parent=11 // pred_region
        _
      $region24: #{tpu_custom_call.1} parent=11 // pred_fallthru
        _
      // Predicated region
      $region25: #{tpu_custom_call.1} parent=11 // pred_check
        %p171 = pneg %p121
      $region26: #{tpu_custom_call.1} parent=11 // pred_check_branch
        %173 = sbr.rel (%p171) target = $region28
      $region27: #{tpu_custom_call.1} parent=11 // pred_region
        _
      $region28: #{tpu_custom_call.1} parent=11 // pred_fallthru
        _
    $region12: #{tpu_custom_call.1} parent=5 // pred_fallthru
      _
    %p174 = scmp.lt.s32.totalorder %s11, 2
    // Predicated region
    $region29: #{tpu_custom_call.1} parent=5 // pred_check
      %p175 = pneg %p174
    $region30: #{tpu_custom_call.1} parent=5 // pred_check_branch
      %177 = sbr.rel (%p175) target = $region32
    $region31: #{tpu_custom_call.1} parent=5 // pred_region
      // Predicated region
      $region33: #{tpu_custom_call.1} parent=31 // pred_check
        %p178 = pneg %p31
      $region34: #{tpu_custom_call.1} parent=31 // pred_check_branch
        %180 = sbr.rel (%p178) target = $region36
      $region35: #{tpu_custom_call.1} parent=31 // pred_region
        %p181 = scmp.lt.s32.totalorder %s11, 1
        %s182 = scalar_select %p181, %s11, 1
        %s183 = smul.addr %s182, 4
        %s184 = smul.addr %s183, 8
        %s185 = scalar_lea.vmem %s0, %s184
      $region36: #{tpu_custom_call.1} parent=31 // pred_fallthru
        _
    $region32: #{tpu_custom_call.1} parent=5 // pred_fallthru
      _
    %p186 = scmp.le.s32.totalorder 1, %s11
    %p187 = scmp.lt.s32.totalorder %s11, 3
    %p188 = pnand %p186, %p187
    %p189 = pneg %p188
    // Predicated region
    $region37: #{tpu_custom_call.1} parent=5 // pred_check
      _
    $region38: #{tpu_custom_call.1} parent=5 // pred_check_branch
      %191 = sbr.rel (%p188) target = $region40
    $region39: #{tpu_custom_call.1} parent=5 // pred_region
      %s192 = ssub.s32 %s11, 1
      %p193 = scmp.lt.s32.totalorder %s16, 1
      %s194 = scalar_select %p193, %s16, 1
      %s195 = smul.addr %s194, 4
      %s196 = smul.addr %s195, 8
      %s197 = scalar_lea.vmem %s0, %s196
      %p198 = pneg %p37
      %p199 = pneg %p34
      %p200 = pneg %p58
      %p201 = pneg %p55
      %p202 = pneg %p79
      %p203 = pneg %p76
      %p204 = pneg %p100
      %p205 = pneg %p97
      %p206 = pneg %p121
      %p207 = pneg %p118
      %p208 = pneg %p147
      %p209 = pneg %p144
      %p210 = scmp.lt.s32.totalorder %s16, 1
      %s211 = scalar_select %p210, %s16, 1
      %s212 = smul.addr %s211, 2
      %s213 = scalar_lea.vmem %s5, %s212
      %p214 = scmp.lt.s32.totalorder %s16, 1
      %s215 = scalar_select %p214, %s16, 1
      %s216 = smul.addr %s215, 4
      %s217 = smul.addr %s216, 8
      %s218 = scalar_lea.vmem %s0, %s217
      %p219 = scmp.lt.s32.totalorder %s16, 1
      %s220 = scalar_select %p219, %s16, 1
      %s221 = smul.addr %s220, 2
      %s222 = scalar_lea.vmem %s5, %s221
      %v223 = vld [vmem:[%s218] sm:$0xff]
      %v224 = vld [vmem:[%s218 + $0x8] sm:$0xff]
      %v225 = vld [vmem:[%s218 + $0x10] sm:$0xff]
      %v226 = vld [vmem:[%s218 + $0x18] sm:$0xff]
      %v227 = vld [vmem:[%s1] sm:$0xff]
      %v228 = vld [vmem:[%s1 + $0x8] sm:$0xff]
      %v229 = vld [vmem:[%s1 + $0x10] sm:$0xf]
      %234 = vrot.lane.b32.xlu0 %v223, 127
      %v235 = vpop.permute.xlu0 %234
      %236 = vrot.lane.b32.xlu0 %v224, 127
      %v237 = vpop.permute.xlu0 %236
      %238 = vrot.lane.b32.xlu0 %v225, 127
      %v239 = vpop.permute.xlu0 %238
      %240 = vrot.lane.b32.xlu0 %v226, 127
      %v241 = vpop.permute.xlu0 %240
      %246 = vrot.lane.b32.xlu0 %v223, 126
      %v247 = vpop.permute.xlu0 %246
      %248 = vrot.lane.b32.xlu0 %v224, 126
      %v249 = vpop.permute.xlu0 %248
      %250 = vrot.lane.b32.xlu0 %v225, 126
      %v251 = vpop.permute.xlu0 %250
      %252 = vrot.lane.b32.xlu0 %v226, 126
      %v253 = vpop.permute.xlu0 %252
      %v258 = vld [vmem:[%s2] sm:$0xff]
      %v259 = vld [vmem:[%s2 + $0x8] sm:$0xff]
      %v260 = vld [vmem:[%s2 + $0x10] sm:$0xf]
      %262 = vset.pattern.permute.xlu0 0
      %263 = vperm.xlu0 %262, %v258
      %v264 = vpop.permute.xlu0 %263
      %267 = vset.pattern.permute.xlu0 0
      %268 = vperm.xlu0 %267, %v259
      %v269 = vpop.permute.xlu0 %268
      %272 = vset.pattern.permute.xlu0 0
      %273 = vperm.xlu0 %272, %v260
      %v274 = vpop.permute.xlu0 %273
      %vm276 = vcmask 785408
      %v278 = vsel %vm276, %v227, 0
      %v281 = vsel %vm276, %v228, 0
      %v284 = vsel %vm276, %v229, 0
      %286 = vmatprep.subr.mxu0 0.0
      %287 = vmatpush1.msra.mxu0 %v223
      %288 = vmatprep.subr.mxu0 0.0
      %289 = vmatpush1.msra.mxu0 %v224
      %290 = vmatprep.subr.mxu0 0.0
      %291 = vmatpush1.msra.mxu0 %v225
      %292 = vmatprep.subr.mxu0 0.0
      %293 = vmatpush1.msra.mxu0 %v226
      %294 = vmatprep.subr.mxu0 0.0
      %295 = vmatpush1.msra.mxu0 %v235
      %296 = vmatprep.subr.mxu0 0.0
      %297 = vmatpush1.msra.mxu0 %v237
      %298 = vmatprep.subr.mxu0 0.0
      %299 = vmatpush1.msra.mxu0 %v239
      %300 = vmatprep.subr.mxu0 0.0
      %301 = vmatpush1.msra.mxu0 %v241
      %302 = vmatprep.subr.mxu0 0.0
      %303 = vmatpush1.msra.mxu0 %v247
      %304 = vmatprep.subr.mxu0 0.0
      %305 = vmatpush1.msra.mxu0 %v249
      %306 = vmatprep.subr.mxu0 0.0
      %307 = vmatpush1.msra.mxu0 %v251
      %308 = vmatprep.subr.mxu0 0.0
      %309 = vmatpush1.msra.mxu0 %v253
      %310 = vmatprep.subr.mxu0 0.0
      %311 = vmatpush1.msra.mxu0 0.0
      %312 = vmatprep.subr.mxu0 0.0
      %313 = vmatpush1.msra.mxu0 0.0
      %314 = vmatprep.subr.mxu0 0.0
      %315 = vmatpush1.msra.mxu0 0.0
      %316 = vmatprep.subr.mxu0 0.0
      %317 = vmatpush1.msra.mxu0 0.0
      %318 = vmatprep.subr.mxu0 0.0
      %319 = vmatpush1.msra.mxu0 0.0
      %320 = vmatprep.subr.mxu0 0.0
      %321 = vmatpush1.msra.mxu0 0.0
      %322 = vmatprep.subr.mxu0 0.0
      %323 = vmatpush1.msra.mxu0 0.0
      %324 = vmatprep.subr.mxu0 0.0
      %325 = vmatpush1.msra.mxu0 0.0
      %326 = vmatprep.subr.mxu0 0.0
      %327 = vmatpush1.msra.mxu0 0.0
      %328 = vmatprep.subr.mxu0 0.0
      %329 = vmatpush1.msra.mxu0 0.0
      %330 = vmatprep.subr.mxu0 0.0
      %331 = vmatpush1.msra.mxu0 0.0
      %332 = vmatprep.subr.mxu0 0.0
      %333 = vmatpush1.msra.mxu0 0.0
      %334 = vmatprep.subr.mxu0 0.0
      %335 = vmatpush1.msra.mxu0 0.0
      %336 = vmatprep.subr.mxu0 0.0
      %337 = vmatpush1.msra.mxu0 0.0
      %338 = vmatprep.subr.mxu0 0.0
      %339 = vmatpush1.msra.mxu0 0.0
      %340 = vmatprep.subr.mxu0 0.0
      %341 = vmatpush1.msra.mxu0 0.0
      %342 = vmatprep.subr.mxu0 0.0
      %343 = vmatpush1.msra.mxu0 0.0
      %344 = vmatprep.subr.mxu0 0.0
      %345 = vmatpush1.msra.mxu0 0.0
      %346 = vmatprep.subr.mxu0 0.0
      %347 = vmatpush1.msra.mxu0 0.0
      %348 = vmatprep.subr.mxu0 0.0
      %349 = vmatpush1.msra.mxu0 0.0
      %350 = vmatprep.mubr.f32.mxu0 0.0
      %351 = vmatmul.mubr.f32.gmra.mrb[0].mxu0 %v278
      %v352 = vpop.f32.mrb[0].mxu0
      %v353 = vadd.f32 %v264, %v352
      %v354 = vpop.f32.mrb[0].mxu0
      %355 = vmatprep.mubr.f32.mxu0 0.0
      %356 = vmatmul.mubr.f32.gmra.mrb[0].mxu0 %v281
      %v357 = vpop.f32.mrb[0].mxu0
      %v358 = vadd.f32 %v269, %v357
      %v359 = vpop.f32.mrb[0].mxu0
      %360 = vmatprep.mubr.f32.mxu0 0.0
      %361 = vmatmul.mubr.f32.gmra.mrb[0].mxu0 %v284
      %v362 = vpop.f32.mrb[0].mxu0
      %v363 = vadd.f32 %v274, %v362
      %v364 = vpop.f32.mrb[0].mxu0
      %365 = vdwg.mxu0
      %v366 = vmax.f32 %v353, 0.0
      %v367 = vmax.f32 %v358, 0.0
      %v368 = vmax.f32 %v363, 0.0
      %372 = vrot.lane.b32.xlu0 %v366, 1
      %v373 = vpop.permute.xlu0 %372
      %374 = vrot.lane.b32.xlu0 %v367, 1
      %v375 = vpop.permute.xlu0 %374
      %376 = vrot.lane.b32.xlu0 %v368, 1
      %v377 = vpop.permute.xlu0 %376
      %vm381 = vcmask 7168
      %v382 = vsel %vm381, 0.0, %v373
      %v383 = vsel %vm381, 0.0, %v375
      %v384 = vsel %vm381, 0.0, %v377
      %vm385 = vcmask 72704
      %v386 = vsel %vm385, %v382, 0.0
      %v387 = vsel %vm385, %v383, 0.0
      %v388 = vsel %vm385, %v384, 0.0
      %v389 = vld [vmem:[%s3] sm:$0x3]
      %vm393 = vcmask 1043456
      %v394 = vrot.slane %v386, 4
      %v395 = vrot.slane %v387, 4
      %v396 = vsel %vm393, %v394, %v395
      %v397 = vrot.slane %v388, 4
      %v398 = vsel %vm393, %v395, %v397
      %399 = vrot.lane.b32.xlu0 %v394, 127
      %v400 = vpop.permute.xlu0 %399
      %401 = vrot.lane.b32.xlu0 %v396, 127
      %v402 = vpop.permute.xlu0 %401
      %403 = vrot.lane.b32.xlu0 %v398, 127
      %v404 = vpop.permute.xlu0 %403
      %408 = vrot.lane.b32.xlu0 %v386, 126
      %v409 = vpop.permute.xlu0 %408
      %410 = vrot.lane.b32.xlu0 %v387, 126
      %v411 = vpop.permute.xlu0 %410
      %412 = vrot.lane.b32.xlu0 %v388, 126
      %v413 = vpop.permute.xlu0 %412
      %v416 = vsel %vm393, %v388, %v400
      %v417 = vld [vmem:[%s4] sm:$0x3]
      %419 = vset.pattern.permute.xlu0 0
      %420 = vperm.xlu0 %419, %v417
      %v421 = vpop.permute.xlu0 %420
      %vm423 = vcmask 490496
      %v425 = vsel %vm423, %v389, 0
      %v427 = vsel %vm393, %v413, 0
      %429 = vmatprep.subr.mxu0 0.0
      %430 = vmatpush1.msra.mxu0 %v386
      %431 = vmatprep.subr.mxu0 0.0
      %432 = vmatpush1.msra.mxu0 %v387
      %433 = vmatprep.subr.mxu0 0.0
      %434 = vmatpush1.msra.mxu0 %v416
      %435 = vmatprep.subr.mxu0 0.0
      %436 = vmatpush1.msra.mxu0 %v402
      %437 = vmatprep.subr.mxu0 0.0
      %438 = vmatpush1.msra.mxu0 %v404
      %439 = vmatprep.subr.mxu0 0.0
      %440 = vmatpush1.msra.mxu0 %v409
      %441 = vmatprep.subr.mxu0 0.0
      %442 = vmatpush1.msra.mxu0 %v411
      %443 = vmatprep.subr.mxu0 0.0
      %444 = vmatpush1.msra.mxu0 %v427
      %445 = vmatprep.subr.mxu0 0.0
      %446 = vmatpush1.msra.mxu0 0.0
      %447 = vmatprep.subr.mxu0 0.0
      %448 = vmatpush1.msra.mxu0 0.0
      %449 = vmatprep.subr.mxu0 0.0
      %450 = vmatpush1.msra.mxu0 0.0
      %451 = vmatprep.subr.mxu0 0.0
      %452 = vmatpush1.msra.mxu0 0.0
      %453 = vmatprep.subr.mxu0 0.0
      %454 = vmatpush1.msra.mxu0 0.0
      %455 = vmatprep.subr.mxu0 0.0
      %456 = vmatpush1.msra.mxu0 0.0
      %457 = vmatprep.subr.mxu0 0.0
      %458 = vmatpush1.msra.mxu0 0.0
      %459 = vmatprep.subr.mxu0 0.0
      %460 = vmatpush1.msra.mxu0 0.0
      %461 = vmatprep.subr.mxu0 0.0
      %462 = vmatpush1.msra.mxu0 0.0
      %463 = vmatprep.subr.mxu0 0.0
      %464 = vmatpush1.msra.mxu0 0.0
      %465 = vmatprep.subr.mxu0 0.0
      %466 = vmatpush1.msra.mxu0 0.0
      %467 = vmatprep.subr.mxu0 0.0
      %468 = vmatpush1.msra.mxu0 0.0
      %469 = vmatprep.subr.mxu0 0.0
      %470 = vmatpush1.msra.mxu0 0.0
      %471 = vmatprep.subr.mxu0 0.0
      %472 = vmatpush1.msra.mxu0 0.0
      %473 = vmatprep.subr.mxu0 0.0
      %474 = vmatpush1.msra.mxu0 0.0
      %475 = vmatprep.subr.mxu0 0.0
      %476 = vmatpush1.msra.mxu0 0.0
      %477 = vmatprep.subr.mxu0 0.0
      %478 = vmatpush1.msra.mxu0 0.0
      %479 = vmatprep.subr.mxu0 0.0
      %480 = vmatpush1.msra.mxu0 0.0
      %481 = vmatprep.subr.mxu0 0.0
      %482 = vmatpush1.msra.mxu0 0.0
      %483 = vmatprep.subr.mxu0 0.0
      %484 = vmatpush1.msra.mxu0 0.0
      %485 = vmatprep.subr.mxu0 0.0
      %486 = vmatpush1.msra.mxu0 0.0
      %487 = vmatprep.subr.mxu0 0.0
      %488 = vmatpush1.msra.mxu0 0.0
      %489 = vmatprep.subr.mxu0 0.0
      %490 = vmatpush1.msra.mxu0 0.0
      %491 = vmatprep.subr.mxu0 0.0
      %492 = vmatpush1.msra.mxu0 0.0
      %493 = vmatprep.mubr.f32.mxu0 0.0
      %494 = vmatmul.mubr.f32.gmra.mrb[0].mxu0 %v425
      %v495 = vpop.f32.mrb[0].mxu0
      %v496 = vadd.f32 %v421, %v495
      %v497 = vpop.f32.mrb[0].mxu0
      %498 = vdwg.mxu0
      %v499 = vmax.f32 %v496, 0.0
      %vm500 = vcmask 58368
      %v501 = vsel %vm500, %v499, 0.0
      %502 = vadd.xlane.f32.xlu0 %v501
      %v503 = vpop.xlane.xlu0 %502
      %v504 = vmul.f32 %v503, 0.125
      %vm505 = vcmask 1024
      %506 = vst.msk [vmem:[%s222] sm:$0x3] %vm505, %v504
      %p507 = scmp.lt.s32.totalorder %s16, 1
      %s508 = scalar_select %p507, %s16, 1
      %s509 = smul.addr %s508, 2
      %s510 = scalar_lea.vmem %s5, %s509
      // Predicated region
      $region41: #{tpu_custom_call.1} parent=39 // pred_check
        %p511 = pneg %p144
      $region42: #{tpu_custom_call.1} parent=39 // pred_check_branch
        %513 = sbr.rel (%p511) target = $region44
      $region43: #{tpu_custom_call.1} parent=39 // pred_region
        _
      $region44: #{tpu_custom_call.1} parent=39 // pred_fallthru
        _
    $region40: #{tpu_custom_call.1} parent=5 // pred_fallthru
      _
    %p514 = scmp.le.s32.totalorder 2, %s11
    // Predicated region
    $region45: #{tpu_custom_call.1} parent=5 // pred_check
      %p515 = pneg %p514
    $region46: #{tpu_custom_call.1} parent=5 // pred_check_branch
      %517 = sbr.rel (%p515) target = $region48
    $region47: #{tpu_custom_call.1} parent=5 // pred_region
      %s518 = ssub.s32 %s11, 2
      // Predicated region
      $region49: #{tpu_custom_call.1} parent=47 // pred_check
        %p519 = pneg %p150
      $region50: #{tpu_custom_call.1} parent=47 // pred_check_branch
        %521 = sbr.rel (%p519) target = $region52
      $region51: #{tpu_custom_call.1} parent=47 // pred_region
        %p522 = scmp.lt.s32.totalorder %s17, 1
        %s523 = scalar_select %p522, %s17, 1
        %s524 = smul.addr %s523, 2
        %s525 = scalar_lea.vmem %s5, %s524
      $region52: #{tpu_custom_call.1} parent=47 // pred_fallthru
        _
    $region48: #{tpu_custom_call.1} parent=5 // pred_fallthru
      _
  $region6: #{tpu_custom_call.1} parent=0 // loop_footer
    %s15 = sadd.s32 1, %s11
  $region7: #{tpu_custom_call.1} parent=0 // loop_footer_branch
    %10 = sbr.rel target = $region3
  $region8: #{tpu_custom_call.1} parent=0 // loop_exit
    _

</llo_original>
